<compile_context>
chip_gen: v5e
topology: v5e:2x2
jax: 0.10.0
libtpu: 0.0.40
codegen_flags: <defaults>
</compile_context>

<pallas_src>
import functools

import jax
import jax.numpy as jnp
from jax.experimental import pallas as pl
from jax.experimental.pallas import tpu as pltpu


def sequence_summary_kernel(cls_ref, h_ref, w_ref, b_ref, o_ref, *,
                            summary_type, use_proj, activation):
    """Whole batch at once: (B, S, H) -> (B, C)."""
    B, S, H = h_ref.shape
    h = h_ref[...].astype(jnp.float32)                      # (B, S, H)

    # ---- token selection / pooling over the sequence axis ------------------
    # Expressed as a per-(batch, seq) weight mask so every summary_type is a
    # single fused multiply + reduce (no gather, no data-dependent slicing).
    if summary_type == "mean":
        pool = jnp.full((B, S), 1.0 / S, dtype=jnp.float32)
    else:
        seq_ids = jax.lax.broadcasted_iota(jnp.int32, (B, S), 1)
        if summary_type == "first":
            idx = jnp.zeros((B, 1), dtype=jnp.int32)
        elif summary_type == "last":
            idx = jnp.full((B, 1), S - 1, dtype=jnp.int32)
        else:  # "cls_index" (default cls_index == S-1 is filled in the wrapper)
            idx = cls_ref[...]                               # (B, 1) int32
        pool = (seq_ids == idx).astype(jnp.float32)          # one-hot over seq

    # summary[b, c] = sum_s pool[b, s] * hidden[b, s, c]
    summary = jnp.sum(h * pool[:, :, None], axis=1)          # (B, H)

    # TODO(synk): summary_first_dropout / summary_last_dropout are identity at
    # inference (eval mode); no RNG state is carried here.

    if use_proj:
        out = jnp.dot(summary, w_ref[...],
                      preferred_element_type=jnp.float32) + b_ref[0]
    else:
        out = summary

    if activation == "tanh":
        out = jnp.tanh(out)

    o_ref[...] = out.astype(o_ref.dtype)


def sequence_summary_forward(hidden_states, cls_index=None, *, w=None, b=None,
                             summary_type="cls_index", activation=None):
    """hidden_states: (B, S, H) float32.  Returns (B, C).

    `w` is the projection weight already laid out as (H, C) (i.e. the
    transpose of PyTorch nn.Linear's (C, H) weight); `b` is (1, C).
    """
    B, S, H = hidden_states.shape
    use_proj = w is not None
    C = w.shape[1] if use_proj else H

    # summary_type == "cls_index" with cls_index=None defaults to the last
    # token, exactly like the PyTorch module.
    if cls_index is None:
        cls_index = jnp.full((B,), S - 1, dtype=jnp.int32)
    cls2d = cls_index.astype(jnp.int32).reshape(B, 1)

    if not use_proj:  # keep the kernel arity fixed; dummy weights are unused.
        w = jnp.zeros((H, C), dtype=jnp.float32)
        b = jnp.zeros((1, C), dtype=jnp.float32)

    kernel = functools.partial(sequence_summary_kernel,
                               summary_type=summary_type,
                               use_proj=use_proj,
                               activation=activation)

    # Single invocation (no grid): total live data is a few KiB, so per-step
    # grid overhead and weight re-DMA would dominate any tiling.
    return pl.pallas_call(
        kernel,
        out_shape=jax.ShapeDtypeStruct((B, C), hidden_states.dtype),
        in_specs=[
            pl.BlockSpec(memory_space=pltpu.MemorySpace.VMEM),  # cls_index (B,1)
            pl.BlockSpec(memory_space=pltpu.MemorySpace.VMEM),  # hidden (B,S,H)
            pl.BlockSpec(memory_space=pltpu.MemorySpace.VMEM),  # w (H,C)
            pl.BlockSpec(memory_space=pltpu.MemorySpace.VMEM),  # b (1,C)
        ],
        out_specs=pl.BlockSpec(memory_space=pltpu.MemorySpace.VMEM),
    )(cls2d, hidden_states, w, b)


def reference_forward(hidden_states, cls_index, w, b, *,
                      summary_type, activation):
    """Pure-JAX reference reproducing the PyTorch forward exactly."""
    B, S, H = hidden_states.shape
    if summary_type == "last":
        output = hidden_states[:, -1]
    elif summary_type == "first":
        output = hidden_states[:, 0]
    elif summary_type == "mean":
        output = hidden_states.mean(axis=1)
    elif summary_type == "cls_index":
        if cls_index is None:
            cls_index = jnp.full((B,), S - 1, dtype=jnp.int32)
        gathered = jnp.take_along_axis(
            hidden_states, cls_index.reshape(B, 1, 1).astype(jnp.int32), axis=1)
        output = gathered[:, 0]
    else:
        raise NotImplementedError(summary_type)
    output = output @ w + b[0]
    if activation == "tanh":
        output = jnp.tanh(output)
    return output


if __name__ == "__main__":
    # Small shapes consistent with the module: batch=2, seq=8, hidden=32.
    # Config exercised: summary_type="cls_index" (GPT default), summary
    # projection to hidden_size, activation="tanh", dropouts identity.
    B, S, H = 2, 8, 32
    summary_type = "cls_index"
    activation = "tanh"

    key = jax.random.PRNGKey(0)
    kh, kw, kc = jax.random.split(key, 3)

    hidden = jax.random.normal(kh, (B, S, H), dtype=jnp.float32)
    w = 0.02 * jax.random.normal(kw, (H, H), dtype=jnp.float32)   # (in, out)
    b = jnp.zeros((1, H), dtype=jnp.float32)
    cls_index = jax.random.randint(kc, (B,), 0, S, dtype=jnp.int32)

    out = sequence_summary_forward(hidden, cls_index, w=w, b=b,
                                   summary_type=summary_type,
                                   activation=activation)
    out = jax.block_until_ready(out)

    ref = reference_forward(hidden, cls_index, w, b,
                            summary_type=summary_type, activation=activation)
    assert out.shape == (B, H)
    assert jnp.allclose(out, ref, rtol=1e-5, atol=1e-5), "cls_index mismatch"

    # Exercise the other summary types against the reference as well.
    for st in ("last", "first", "mean"):
        o = sequence_summary_forward(hidden, None, w=w, b=b,
                                     summary_type=st, activation=activation)
        o = jax.block_until_ready(o)
        r = reference_forward(hidden, None, w, b,
                              summary_type=st, activation=activation)
        assert jnp.allclose(o, r, rtol=1e-5, atol=1e-5), f"{st} mismatch"

    print("KERNEL_OK")
</pallas_src>

<mosaic_0001>
module attributes {stable_mosaic.version = 11 : i64} {
  func.func @sequence_summary_kernel(%arg0: memref<2x1xi32, #tpu.memory_space<vmem>>, %arg1: memref<2x8x32xf32, #tpu.memory_space<vmem>>, %arg2: memref<32x32xf32, #tpu.memory_space<vmem>>, %arg3: memref<1x32xf32, #tpu.memory_space<vmem>>, %arg4: memref<2x32xf32, #tpu.memory_space<vmem>>) attributes {dimension_semantics = [], scalar_prefetch = 0 : i64, scratch_operands = 0 : i64, tpu.core_type = #tpu.core_type<tc>} {
    %c0 = arith.constant 0 : index
    %c0_0 = arith.constant 0 : index
    %c0_1 = arith.constant 0 : index
    %0 = vector.load %arg1[%c0, %c0_0, %c0_1] : memref<2x8x32xf32, #tpu.memory_space<vmem>>, vector<2x8x32xf32>
    %1 = tpu.iota {dimensions = array<i32: 1>} : vector<2x8xi32>
    %c0_2 = arith.constant 0 : index
    %c0_3 = arith.constant 0 : index
    %2 = vector.load %arg0[%c0_2, %c0_3] : memref<2x1xi32, #tpu.memory_space<vmem>>, vector<2x1xi32>
    %3 = vector.broadcast %2 : vector<2x1xi32> to vector<2x8xi32>
    %4 = arith.cmpi eq, %1, %3 : vector<2x8xi32>
    %5 = arith.extui %4 : vector<2x8xi1> to vector<2x8xi32>
    %6 = arith.sitofp %5 : vector<2x8xi32> to vector<2x8xf32>
    %7 = vector.shape_cast %6 : vector<2x8xf32> to vector<2x8x1xf32>
    %8 = vector.broadcast %7 : vector<2x8x1xf32> to vector<2x8x32xf32>
    %9 = arith.mulf %0, %8 : vector<2x8x32xf32>
    %cst = arith.constant dense<0.000000e+00> : vector<2x32xf32>
    %10 = vector.multi_reduction <add>, %9, %cst [1] : vector<2x8x32xf32> to vector<2x32xf32>
    %c0_4 = arith.constant 0 : index
    %c0_5 = arith.constant 0 : index
    %11 = vector.load %arg2[%c0_4, %c0_5] : memref<32x32xf32, #tpu.memory_space<vmem>>, vector<32x32xf32>
    %cst_6 = arith.constant dense<0.000000e+00> : vector<2x32xf32>
    %12 = tpu.matmul %10, %11, %cst_6 {dimension_numbers = #tpu.dot_dimension_numbers<[1], [0], [0], [1], [0, 0, 1, 1], [], []>} : vector<2x32xf32>, vector<32x32xf32>, vector<2x32xf32> -> vector<2x32xf32>
    %c0_7 = arith.constant 0 : index
    %c0_8 = arith.constant 0 : index
    %13 = vector.load %arg3[%c0_7, %c0_8] : memref<1x32xf32, #tpu.memory_space<vmem>>, vector<1x32xf32>
    %14 = vector.shape_cast %13 : vector<1x32xf32> to vector<32xf32>
    %15 = vector.shape_cast %14 : vector<32xf32> to vector<1x32xf32>
    %16 = vector.broadcast %15 : vector<1x32xf32> to vector<2x32xf32>
    %17 = arith.addf %12, %16 : vector<2x32xf32>
    %18 = math.tanh %17 : vector<2x32xf32>
    %c0_9 = arith.constant 0 : index
    %c0_10 = arith.constant 0 : index
    %19 = vector.load %arg4[%c0_9, %c0_10] : memref<2x32xf32, #tpu.memory_space<vmem>>, vector<2x32xf32>
    tpu.vector_store %arg4[%c0_9, %c0_10], %18 {strides = array<i32>} : memref<2x32xf32, #tpu.memory_space<vmem>>, vector<2x32xf32>,
    return
  }
}

</mosaic_0001>

<llo_original>
// kernel: tpu_custom_call.1
$region0: #{tpu_custom_call.1}
  #allocation0 [shape = 'u32[]', space=smem, size = 0x4, offset = 0x4, fixed_abs, tag = 'smem constant byte address 0x4 - core index']
  #allocation1 [shape = 'u32[72,128]{1,0:T(1,128)}', space=vmem, size = 0x9000, scoped, tag = 'internal scratch']
  %s0 = inlined_call_operand.vmem [shape: s32[2,1], index: 0, kind: input, shape index: {}]
  %s1 = inlined_call_operand.hbm [shape: f32[2,8,32], index: 1, kind: input, shape index: {}]
  %s2 = inlined_call_operand.hbm [shape: f32[32,32], index: 2, kind: input, shape index: {}]
  %s3 = inlined_call_operand.vmem [shape: f32[1,32], index: 3, kind: input, shape index: {}]
  %s4 = inlined_call_operand.hbm [shape: f32[2,32], index: 4, kind: output, shape index: {}]
  %s5 = sld [smem:[#allocation0]]
  $region34: #{tpu_custom_call.1} parent=0
    _
  %s7 = ssub.s32 1, %s5
  %s8 = scalar_select 0, %s7, %s5
  $region1: #{tpu_custom_call.1} parent=0
    #allocation2 [shape = 'u8[8192]{0}', space=vmem, size = 0x2000, scoped, tag = 'input window, operand 1, single buffered']
    #allocation3 [shape = 's32[1]{0}', space=sflag, size = 0x4, scoped, tag = 'scoped memory for tpu_custom_call.1']
    #allocation4 [shape = 's32[1]{0}', space=sflag, size = 0x4, scoped, tag = 'scoped memory for tpu_custom_call.1']
    #allocation5 [shape = 'u8[16384]{0}', space=vmem, size = 0x4000, scoped, tag = 'input window, operand 2, single buffered']
    #allocation6 [shape = 's32[1]{0}', space=sflag, size = 0x4, scoped, tag = 'scoped memory for tpu_custom_call.1']
    #allocation7 [shape = 'u8[1024]{0}', space=vmem, size = 0x400, scoped, tag = 'output window, operand 0, single buffered']
    %9 = vsyncpa [#allocation3], 0
    %10 = vsyncpa [#allocation6], 0
    %11 = vsyncpa [#allocation4], 0
    // Predicated region
    $region2: #{tpu_custom_call.1} parent=1 // pred_check
      _
    $region3: #{tpu_custom_call.1} parent=1 // pred_check_branch
      %13 = sbr.rel (0) target = $region5
    $region4: #{tpu_custom_call.1} parent=1 // pred_region
      _
    $region5: #{tpu_custom_call.1} parent=1 // pred_fallthru
      _
    // Predicated region
    $region6: #{tpu_custom_call.1} parent=1 // pred_check
      _
    $region7: #{tpu_custom_call.1} parent=1 // pred_check_branch
      %15 = sbr.rel (0) target = $region9
    $region8: #{tpu_custom_call.1} parent=1 // pred_region
      %17 = vsyncadd [#allocation3], 0
      %s18 = sshll.u32 %s1, 4
      %s19 = int_to_ptr.hbm [resolvable:$true] %s18
      %s20 = sshll.u32 [#allocation2], 4
      %s21 = int_to_ptr.vmem [resolvable:$true] %s20
      %26 = dma.hbm_to_vmem [thread:$0]  %s19, 256, %s21, [#allocation3], 128, 128, 8
    $region9: #{tpu_custom_call.1} parent=1 // pred_fallthru
      _
    // Predicated region
    $region10: #{tpu_custom_call.1} parent=1 // pred_check
      _
    $region11: #{tpu_custom_call.1} parent=1 // pred_check_branch
      %28 = sbr.rel (0) target = $region13
    $region12: #{tpu_custom_call.1} parent=1 // pred_region
      %30 = vsyncadd [#allocation6], 0
      %s31 = sshll.u32 %s2, 4
      %s32 = int_to_ptr.hbm [resolvable:$true] %s31
      %s33 = sshll.u32 [#allocation5], 4
      %s34 = int_to_ptr.vmem [resolvable:$true] %s33
      %39 = dma.hbm_to_vmem [thread:$0]  %s32, 512, %s34, [#allocation6], 128, 128, 8
    $region13: #{tpu_custom_call.1} parent=1 // pred_fallthru
      _
    // Predicated region
    $region14: #{tpu_custom_call.1} parent=1 // pred_check
      _
    $region15: #{tpu_custom_call.1} parent=1 // pred_check_branch
      %41 = sbr.rel (0) target = $region17
    $region16: #{tpu_custom_call.1} parent=1 // pred_region
      _
    $region17: #{tpu_custom_call.1} parent=1 // pred_fallthru
      _
    // Predicated region
    $region18: #{tpu_custom_call.1} parent=1 // pred_check
      _
    $region19: #{tpu_custom_call.1} parent=1 // pred_check_branch
      %43 = sbr.rel (0) target = $region21
    $region20: #{tpu_custom_call.1} parent=1 // pred_region
      %45 = dma.done [#allocation3], 256
    $region21: #{tpu_custom_call.1} parent=1 // pred_fallthru
      _
    // Predicated region
    $region22: #{tpu_custom_call.1} parent=1 // pred_check
      _
    $region23: #{tpu_custom_call.1} parent=1 // pred_check_branch
      %47 = sbr.rel (0) target = $region25
    $region24: #{tpu_custom_call.1} parent=1 // pred_region
      %49 = dma.done [#allocation6], 512
    $region25: #{tpu_custom_call.1} parent=1 // pred_fallthru
      _
    %v50 = vld [vmem:[#allocation2] sm:$0xff]
    %v51 = vld [vmem:[#allocation2 + $0x8] sm:$0xff]
    %v52 = vlaneseq
    %v53 = vand.u32 %v52, 127
    %v54 = vld [vmem:[%s0] sm:$0x3]
    %55 = vset.pattern.permute.xlu0 0
    %56 = vperm.xlu0 %55, %v54
    %v57 = vpop.permute.xlu0 %56
    %vm58 = vcmp.eq.s32.totalorder %v53, %v57
    %v59 = vsel %vm58, 1, 0
    %v60 = vcvt.s32.f32 %v59
    %v61 = vperm.slane %v60, 0
    %v62 = vlaneseq
    %v63 = vshrl.u32 %v62, 7
    %65 = vset.pattern.permute.xlu0 %v63
    %66 = vperm.xlu0 %65, %v61
    %v67 = vpop.permute.xlu0 %66
    %v68 = vperm.slane %v60, 1
    %v69 = vlaneseq
    %v70 = vshrl.u32 %v69, 7
    %72 = vset.pattern.permute.xlu0 %v70
    %73 = vperm.xlu0 %72, %v68
    %v74 = vpop.permute.xlu0 %73
    %v75 = vmul.f32 %v50, %v67
    %v76 = vmul.f32 %v51, %v74
    %vm77 = vcmask 261120
    %v78 = vsel %vm77, %v75, 0.0
    %v79 = vrot.slane %v78, 4
    %v80 = vadd.f32 %v78, %v79
    %v81 = vrot.slane %v80, 2
    %v82 = vadd.f32 %v80, %v81
    %v83 = vrot.slane %v82, 1
    %v84 = vadd.f32 %v82, %v83
    %v85 = vsel %vm77, %v76, 0.0
    %v86 = vrot.slane %v85, 4
    %v87 = vadd.f32 %v85, %v86
    %v88 = vrot.slane %v87, 2
    %v89 = vadd.f32 %v87, %v88
    %v90 = vrot.slane %v89, 1
    %v91 = vadd.f32 %v89, %v90
    %v92 = vld [vmem:[#allocation5] sm:$0xff]
    %v93 = vld [vmem:[#allocation5 + $0x8] sm:$0xff]
    %v94 = vld [vmem:[#allocation5 + $0x10] sm:$0xff]
    %v95 = vld [vmem:[#allocation5 + $0x18] sm:$0xff]
    %v96 = vld [vmem:[%s3] sm:$0x1]
    %v98 = vperm.slane %v96, 0
    %vm102 = vcmask 1041409
    %v103 = vsel %vm102, %v91, %v84
    %v104 = vsel %vm77, %v103, 0
    %106 = vmatpush.msra.mxu0 0.0
    %107 = vmatpush.msra.mxu0 0.0
    %108 = vmatpush.msra.mxu0 0.0
    %109 = vmatpush.msra.mxu0 0.0
    %110 = vmatpush.msra.mxu0 0.0
    %111 = vmatpush.msra.mxu0 0.0
    %112 = vmatpush.msra.mxu0 0.0
    %113 = vmatpush.msra.mxu0 0.0
    %114 = vmatpush.msra.mxu0 0.0
    %115 = vmatpush.msra.mxu0 0.0
    %116 = vmatpush.msra.mxu0 0.0
    %117 = vmatpush.msra.mxu0 0.0
    %118 = vmatpush.msra.mxu0 %v95
    %119 = vmatpush.msra.mxu0 %v94
    %120 = vmatpush.msra.mxu0 %v93
    %121 = vmatpush.msra.mxu0 %v92
    %122 = vmatmul.f32.gmra.mxu0 %v104
    %v123 = vpop.f32.mrf.mxu0
    %v124 = vadd.f32 %v98, %v123
    %125 = vdwg.mxu0
    %v126 = vtanh.pop %v124
    %vm127 = vcmask 254976
    %128 = vst.msk [vmem:[#allocation7] sm:$0x3] %vm127, %v126
    // Predicated region
    $region26: #{tpu_custom_call.1} parent=1 // pred_check
      _
    $region27: #{tpu_custom_call.1} parent=1 // pred_check_branch
      %130 = sbr.rel (0) target = $region29
    $region28: #{tpu_custom_call.1} parent=1 // pred_region
      %132 = vsyncadd [#allocation4], 0
      %s134 = sshll.u32 [#allocation7], 4
      %s135 = int_to_ptr.vmem [resolvable:$true] %s134
      %s136 = sshll.u32 %s4, 4
      %s137 = int_to_ptr.hbm [resolvable:$true] %s136
      %139 = dma.vmem_to_hbm [thread:$0]  %s135, 32, %s137, [#allocation4]
    $region29: #{tpu_custom_call.1} parent=1 // pred_fallthru
      _
    // Predicated region
    $region30: #{tpu_custom_call.1} parent=1 // pred_check
      _
    $region31: #{tpu_custom_call.1} parent=1 // pred_check_branch
      %141 = sbr.rel (0) target = $region33
    $region32: #{tpu_custom_call.1} parent=1 // pred_region
      %143 = dma.done [#allocation4], 32
    $region33: #{tpu_custom_call.1} parent=1 // pred_fallthru
      _
    %144 = vsyncpa [#allocation3], 1
    %145 = vsyncpa [#allocation6], 1
    %146 = vsyncpa [#allocation4], 1

</llo_original>
